<compile_context>
chip_gen: v7x
topology: tpu7x:2x2x1
jax: 0.10.0
libtpu: 0.0.40
codegen_flags: <defaults>
</compile_context>

<pallas_src>
import functools

import jax
import jax.numpy as jnp
from jax.experimental import pallas as pl
from jax.experimental.pallas import tpu as pltpu

LANES = 128
REDUCE_MAX_BLOCK_ROWS = 4096   # 2 MiB f32 per input block
ELEMWISE_MAX_BLOCK_ROWS = 2048  # 3 streams x 2 buffers stays inside 16 MiB (v5e)


# ----------------------------- kernels ------------------------------------


def _gm_reduce_kernel(sigma_ref, x_ref, y_ref, out_ref, acc_ref, *,
                      total_rows, block_rows, needs_mask):
    """Partial sums of obj into an (8, 128) accumulator.  Grid = (num_blocks,)."""
    i = pl.program_id(0)

    @pl.when(i == 0)
    def _():
        acc_ref[...] = jnp.zeros_like(acc_ref)

    s2 = sigma_ref[0]
    d = x_ref[...].astype(jnp.float32) - y_ref[...].astype(jnp.float32)
    sq = d * d
    obj = sq * pl.reciprocal(sq + s2, approx=False)

    if needs_mask:
        # The last block is partial; rows past `total_rows` hold unspecified
        # data in the VMEM buffer -> zero them before accumulating.
        rid = i * block_rows + jax.lax.broadcasted_iota(jnp.int32, obj.shape, 0)
        obj = jnp.where(rid < total_rows, obj, jnp.float32(0.0))

    # Sublane-group partial sums: pure VPU adds into one (8, 128) tile.
    acc_ref[...] += jnp.sum(obj.reshape(-1, 8, LANES), axis=0)

    @pl.when(i == pl.num_programs(0) - 1)
    def _():
        # Single cross-lane reduce, off the per-step critical path.
        out_ref[0, 0] = jnp.sum(acc_ref[...])


def _gm_elementwise_kernel(sigma_ref, x_ref, y_ref, o_ref):
    s2 = sigma_ref[0]
    d = x_ref[...].astype(jnp.float32) - y_ref[...].astype(jnp.float32)
    sq = d * d
    o_ref[...] = (sq * pl.reciprocal(sq + s2, approx=False)).astype(o_ref.dtype)


# ----------------------------- layout helpers ------------------------------


def _round_up(v, m):
    return ((v + m - 1) // m) * m


def _sublane_packing(dtype):
    """Rows per sublane tile: 8 for 4-byte, 16 for 2-byte, 32 for 1-byte."""
    return 8 * max(1, 4 // jnp.dtype(dtype).itemsize)


def _layout(rows, dtype, max_block_rows):
    """Pick (block_rows, num_blocks) for a (rows, 128) slab."""
    pack = _sublane_packing(dtype)
    if rows <= max_block_rows:
        block_rows = _round_up(rows, pack)
        num_blocks = 1
    else:
        block_rows = max_block_rows  # multiple of 32 -> fine for all packings
        num_blocks = -(-rows // block_rows)
    return block_rows, num_blocks


def _flatten_to_slab(arr):
    """Flatten to (rows, 128) in native dtype; pad lanes only if numel%128."""
    flat = arr.reshape(-1)
    n = flat.size
    padded = _round_up(n, LANES)
    if padded != n:
        flat = jnp.pad(flat, (0, padded - n))  # zeros -> obj(0,0) == 0, sum-safe
    return flat.reshape(padded // LANES, LANES)


# ----------------------------- wrapper -------------------------------------


def gm_loss(x, y, sigma, reduction="mean"):
    """Pallas TPU implementation of the GM module's forward pass."""
    assert x.shape == y.shape, "x and y must have the same shape"
    n = x.size
    sigma_sq = (jnp.asarray(sigma, jnp.float32) ** 2).reshape(1)

    x2 = _flatten_to_slab(x)
    y2 = _flatten_to_slab(y)
    rows = x2.shape[0]

    if reduction in ("mean", "sum"):
        block_rows, num_blocks = _layout(rows, x.dtype, REDUCE_MAX_BLOCK_ROWS)
        needs_mask = (num_blocks * block_rows) != rows

        kernel = functools.partial(
            _gm_reduce_kernel,
            total_rows=rows,
            block_rows=block_rows,
            needs_mask=needs_mask,
        )
        out = pl.pallas_call(
            kernel,
            out_shape=jax.ShapeDtypeStruct((1, 1), jnp.float32),
            grid_spec=pltpu.PrefetchScalarGridSpec(
                num_scalar_prefetch=0,
                grid=(num_blocks,),
                in_specs=[
                    pl.BlockSpec(memory_space=pltpu.SMEM),        # sigma^2
                    pl.BlockSpec((block_rows, LANES), lambda i: (i, 0)),
                    pl.BlockSpec((block_rows, LANES), lambda i: (i, 0)),
                ],
                out_specs=pl.BlockSpec(
                    (1, 1), lambda i: (0, 0), memory_space=pltpu.SMEM
                ),
                scratch_shapes=[pltpu.VMEM((8, LANES), jnp.float32)],
            ),
            compiler_params=pltpu.CompilerParams(
                dimension_semantics=("arbitrary",)
            ),
        )(sigma_sq, x2, y2)

        total = out[0, 0]
        if reduction == "mean":
            total = total * jnp.float32(1.0 / n)
        return total  # 0-dim f32 scalar (like torch.mean / torch.sum)

    elif reduction == "None":
        block_rows, num_blocks = _layout(rows, x.dtype, ELEMWISE_MAX_BLOCK_ROWS)

        out2 = pl.pallas_call(
            _gm_elementwise_kernel,
            out_shape=jax.ShapeDtypeStruct((rows, LANES), x.dtype),
            grid_spec=pltpu.PrefetchScalarGridSpec(
                num_scalar_prefetch=0,
                grid=(num_blocks,),
                in_specs=[
                    pl.BlockSpec(memory_space=pltpu.SMEM),        # sigma^2
                    pl.BlockSpec((block_rows, LANES), lambda i: (i, 0)),
                    pl.BlockSpec((block_rows, LANES), lambda i: (i, 0)),
                ],
                out_specs=pl.BlockSpec((block_rows, LANES), lambda i: (i, 0)),
            ),
            compiler_params=pltpu.CompilerParams(
                dimension_semantics=("parallel",)
            ),
        )(sigma_sq, x2, y2)

        if rows * LANES == n:
            return out2.reshape(x.shape)  # no pad was added, no slice needed
        return out2.reshape(-1)[:n].reshape(x.shape)

    else:
        raise ValueError(f"unsupported reduction: {reduction!r}")


# ----------------------------- reference & test -----------------------------


def gm_loss_ref(x, y, sigma, reduction="mean"):
    x = x.astype(jnp.float32)
    y = y.astype(jnp.float32)
    sq = jnp.square(x - y)
    obj = sq / (sq + sigma**2)
    if reduction == "mean":
        return jnp.mean(obj)
    elif reduction == "sum":
        return jnp.sum(obj)
    elif reduction == "None":
        return obj


if __name__ == "__main__":
    key = jax.random.PRNGKey(0)
    sigma = 1.5
    ok = True

    # Small NCHW-like shapes: exact-fit, partial-edge-block, and lane-pad cases.
    for shape in [(2, 4, 16, 16), (2, 4, 16, 20), (3, 5, 7, 11)]:
        kx, ky, key = jax.random.split(key, 3)
        x = jax.random.normal(kx, shape, dtype=jnp.float32)
        y = jax.random.normal(ky, shape, dtype=jnp.float32)
        for reduction in ("mean", "sum", "None"):
            out = jax.block_until_ready(gm_loss(x, y, sigma, reduction=reduction))
            ref = gm_loss_ref(x, y, sigma, reduction=reduction)
            if not jnp.allclose(out, ref, rtol=1e-5, atol=1e-5):
                ok = False
                print(f"MISMATCH shape={shape} reduction={reduction}")
            if reduction == "None" and out.shape != x.shape:
                ok = False
                print(f"SHAPE MISMATCH shape={shape}")

    # bf16 inputs exercise the 16-row sublane-packing path (compute stays f32).
    kx, ky, key = jax.random.split(key, 3)
    xb = jax.random.normal(kx, (2, 4, 16, 16), dtype=jnp.bfloat16)
    yb = jax.random.normal(ky, (2, 4, 16, 16), dtype=jnp.bfloat16)
    out = jax.block_until_ready(gm_loss(xb, yb, sigma, reduction="mean"))
    ref = gm_loss_ref(xb, yb, sigma, reduction="mean")
    if not jnp.allclose(out, ref, rtol=1e-5, atol=1e-5):
        ok = False
        print("MISMATCH bf16 mean")

    if ok:
        print("KERNEL_OK")
</pallas_src>

<mosaic_0001>
module attributes {stable_mosaic.version = 11 : i64} {
  func.func @_gm_reduce_kernel(%arg0: i32, %arg1: memref<1xf32, #tpu.memory_space<smem>>, %arg2: memref<16x128xf32, #tpu.memory_space<vmem>>, %arg3: memref<16x128xf32, #tpu.memory_space<vmem>>, %arg4: memref<1x1xf32, #tpu.memory_space<smem>>, %arg5: memref<8x128xf32, #tpu.memory_space<vmem>>) attributes {dimension_semantics = [#tpu.dimension_semantics<arbitrary>], iteration_bounds = array<i64: 1>, scalar_prefetch = 0 : i64, scratch_operands = 1 : i64, tpu.core_type = #tpu.core_type<tc>, window_params = [{transform_indices = @transform_0, window_bounds = array<i64: 1>}, {transform_indices = @transform_1, window_bounds = array<i64: 16, 128>}, {transform_indices = @transform_2, window_bounds = array<i64: 16, 128>}, {transform_indices = @transform_3, window_bounds = array<i64: 1, 1>}]} {
    %c0_i32 = arith.constant 0 : i32
    %0 = arith.cmpi eq, %arg0, %c0_i32 : i32
    %1 = arith.extui %0 : i1 to i32
    %c0_i32_0 = arith.constant 0 : i32
    %2 = arith.cmpi ne, %1, %c0_i32_0 : i32
    scf.if %2 {
      %cst_11 = arith.constant 0.000000e+00 : f32
      %20 = vector.broadcast %cst_11 : f32 to vector<8x128xf32>
      %c0_12 = arith.constant 0 : index
      %c0_13 = arith.constant 0 : index
      %21 = vector.load %arg5[%c0_12, %c0_13] : memref<8x128xf32, #tpu.memory_space<vmem>>, vector<8x128xf32>
      tpu.vector_store %arg5[%c0_12, %c0_13], %20 {strides = array<i32>} : memref<8x128xf32, #tpu.memory_space<vmem>>, vector<8x128xf32>,
    } else {
    }
    %c0 = arith.constant 0 : index
    %3 = memref.load %arg1[%c0] : memref<1xf32, #tpu.memory_space<smem>>
    %c0_1 = arith.constant 0 : index
    %c0_2 = arith.constant 0 : index
    %4 = vector.load %arg2[%c0_1, %c0_2] : memref<16x128xf32, #tpu.memory_space<vmem>>, vector<16x128xf32>
    %c0_3 = arith.constant 0 : index
    %c0_4 = arith.constant 0 : index
    %5 = vector.load %arg3[%c0_3, %c0_4] : memref<16x128xf32, #tpu.memory_space<vmem>>, vector<16x128xf32>
    %6 = arith.subf %4, %5 : vector<16x128xf32>
    %7 = arith.mulf %6, %6 : vector<16x128xf32>
    %8 = vector.broadcast %3 : f32 to vector<16x128xf32>
    %9 = arith.addf %7, %8 : vector<16x128xf32>
    %10 = tpu.reciprocal %9 : vector<16x128xf32> -> vector<16x128xf32>
    %11 = arith.mulf %7, %10 : vector<16x128xf32>
    %c0_5 = arith.constant 0 : index
    %c0_6 = arith.constant 0 : index
    %12 = vector.load %arg5[%c0_5, %c0_6] : memref<8x128xf32, #tpu.memory_space<vmem>>, vector<8x128xf32>
    %13 = vector.shape_cast %11 : vector<16x128xf32> to vector<2x8x128xf32>
    %cst = arith.constant dense<0.000000e+00> : vector<8x128xf32>
    %14 = vector.multi_reduction <add>, %13, %cst [0] : vector<2x8x128xf32> to vector<8x128xf32>
    %15 = arith.addf %12, %14 : vector<8x128xf32>
    %c0_7 = arith.constant 0 : index
    %c0_8 = arith.constant 0 : index
    %16 = vector.load %arg5[%c0_7, %c0_8] : memref<8x128xf32, #tpu.memory_space<vmem>>, vector<8x128xf32>
    tpu.vector_store %arg5[%c0_7, %c0_8], %15 {strides = array<i32>} : memref<8x128xf32, #tpu.memory_space<vmem>>, vector<8x128xf32>,
    %c0_i32_9 = arith.constant 0 : i32
    %17 = arith.cmpi eq, %arg0, %c0_i32_9 : i32
    %18 = arith.extui %17 : i1 to i32
    %c0_i32_10 = arith.constant 0 : i32
    %19 = arith.cmpi ne, %18, %c0_i32_10 : i32
    scf.if %19 {
      %c0_11 = arith.constant 0 : index
      %c0_12 = arith.constant 0 : index
      %20 = vector.load %arg5[%c0_11, %c0_12] : memref<8x128xf32, #tpu.memory_space<vmem>>, vector<8x128xf32>
      %21 = vector.shape_cast %20 : vector<8x128xf32> to vector<1x8x128xf32>
      %cst_13 = arith.constant dense<0.000000e+00> : vector<1xf32>
      %22 = vector.multi_reduction <add>, %21, %cst_13 [1, 2] : vector<1x8x128xf32> to vector<1xf32>
      %23 = vector.shape_cast %22 : vector<1xf32> to vector<1x1x1xf32>
      %24 = vector.extract %23[0, 0, 0] : f32 from vector<1x1x1xf32>
      %c0_14 = arith.constant 0 : index
      %c0_15 = arith.constant 0 : index
      %25 = memref.load %arg4[%c0_14, %c0_15] : memref<1x1xf32, #tpu.memory_space<smem>>
      memref.store %24, %arg4[%c0_14, %c0_15] : memref<1x1xf32, #tpu.memory_space<smem>>
    } else {
    }
    return
  }
  func.func @transform_0(%arg0: i32) -> i32 {
    %c0_i32 = arith.constant 0 : i32
    %c0_i32_0 = arith.constant 0 : i32
    return %c0_i32 : i32
  }
  func.func @transform_1(%arg0: i32) -> (i32, i32) {
    %c0_i32 = arith.constant 0 : i32
    %c0_i32_0 = arith.constant 0 : i32
    return %arg0, %c0_i32 : i32, i32
  }
  func.func @transform_2(%arg0: i32) -> (i32, i32) {
    %c0_i32 = arith.constant 0 : i32
    %c0_i32_0 = arith.constant 0 : i32
    return %arg0, %c0_i32 : i32, i32
  }
  func.func @transform_3(%arg0: i32) -> (i32, i32) {
    %c0_i32 = arith.constant 0 : i32
    %c0_i32_0 = arith.constant 0 : i32
    %c0_i32_1 = arith.constant 0 : i32
    return %c0_i32, %c0_i32_0 : i32, i32
  }
}

</mosaic_0001>

<llo_original>
// kernel: tpu_custom_call.1
$region0: #{tpu_custom_call.1}
  #allocation0 [shape = 'u32[]', space=smem, size = 0x4, offset = 0x4, fixed_abs, tag = 'smem constant byte address 0x4 - core index']
  #allocation1 [shape = 'u32[144,128]{1,0:T(1,128)}', space=vmem, size = 0x12000, scoped, tag = 'internal scratch']
  #allocation2 [shape = 'f32[8,128]{1,0:T(8,128)}', space=vmem, size = 0x1000, scoped, tag = 'scratch operand']
  #allocation3 [shape = 'f32[1]{0:T(128)S(6)}', space=smem, size = 0x200, scoped, tag = 'scoped memory for tpu_custom_call.1']
  %s0 = inlined_call_operand.<no memory space> [shape: f32[1], index: 0, kind: input, shape index: {}]
  %s1 = inlined_call_operand.hbm [shape: f32[16,128], index: 1, kind: input, shape index: {}]
  %s2 = inlined_call_operand.hbm [shape: f32[16,128], index: 2, kind: input, shape index: {}]
  %s3 = inlined_call_operand.hbm [shape: f32[1,1], index: 3, kind: output, shape index: {}]
  %s4 = sld [smem:[#allocation0]]
  $region38: #{tpu_custom_call.1} parent=0
    _
  %s6 = ssub.s32 1, %s4
  %s7 = scalar_select 0, %s6, %s4
  %8 = sst [smem:[#allocation3]] %s0
  $region1: #{tpu_custom_call.1} parent=0
    #allocation4 [shape = 'u8[8192]{0}', space=vmem, size = 0x2000, scoped, tag = 'input window, operand 1, single buffered']
    #allocation5 [shape = 's32[1]{0}', space=sflag, size = 0x4, scoped, tag = 'scoped memory for tpu_custom_call.1']
    #allocation6 [shape = 's32[1]{0}', space=sflag, size = 0x4, scoped, tag = 'scoped memory for tpu_custom_call.1']
    #allocation7 [shape = 'u8[8192]{0}', space=vmem, size = 0x2000, scoped, tag = 'input window, operand 2, single buffered']
    #allocation8 [shape = 's32[1]{0}', space=sflag, size = 0x4, scoped, tag = 'scoped memory for tpu_custom_call.1']
    #allocation9 [shape = 'u8[512]{0}', space=smem, size = 0x200, scoped, tag = 'output window, operand 0, single buffered']
    %9 = vsyncpa [#allocation5], 0
    %10 = vsyncpa [#allocation8], 0
    %11 = vsyncpa [#allocation6], 0
    // Predicated region
    $region2: #{tpu_custom_call.1} parent=1 // pred_check
      _
    $region3: #{tpu_custom_call.1} parent=1 // pred_check_branch
      %13 = sbr.rel (0) target = $region5
    $region4: #{tpu_custom_call.1} parent=1 // pred_region
      _
    $region5: #{tpu_custom_call.1} parent=1 // pred_fallthru
      _
    // Predicated region
    $region6: #{tpu_custom_call.1} parent=1 // pred_check
      _
    $region7: #{tpu_custom_call.1} parent=1 // pred_check_branch
      %15 = sbr.rel (0) target = $region9
    $region8: #{tpu_custom_call.1} parent=1 // pred_region
      %s17 = ssub.s32 256, 256
      %18 = vsyncadd [#allocation5], %s17
      %s19 = sshll.u32 [#allocation4], 4
      %s20 = int_to_ptr.vmem [resolvable:$true] %s19
      %25 = dma.hbm_to_vmem [thread:$0]  %s1, 256, %s20, [#allocation5], 128, 128, 8
    $region9: #{tpu_custom_call.1} parent=1 // pred_fallthru
      _
    // Predicated region
    $region10: #{tpu_custom_call.1} parent=1 // pred_check
      _
    $region11: #{tpu_custom_call.1} parent=1 // pred_check_branch
      %27 = sbr.rel (0) target = $region13
    $region12: #{tpu_custom_call.1} parent=1 // pred_region
      %s29 = ssub.s32 256, 256
      %30 = vsyncadd [#allocation8], %s29
      %s31 = sshll.u32 [#allocation7], 4
      %s32 = int_to_ptr.vmem [resolvable:$true] %s31
      %37 = dma.hbm_to_vmem [thread:$0]  %s2, 256, %s32, [#allocation8], 128, 128, 8
    $region13: #{tpu_custom_call.1} parent=1 // pred_fallthru
      _
    // Predicated region
    $region14: #{tpu_custom_call.1} parent=1 // pred_check
      _
    $region15: #{tpu_custom_call.1} parent=1 // pred_check_branch
      %39 = sbr.rel (0) target = $region17
    $region16: #{tpu_custom_call.1} parent=1 // pred_region
      %40 = dma.done [#allocation5], 256
    $region17: #{tpu_custom_call.1} parent=1 // pred_fallthru
      _
    // Predicated region
    $region18: #{tpu_custom_call.1} parent=1 // pred_check
      _
    $region19: #{tpu_custom_call.1} parent=1 // pred_check_branch
      %42 = sbr.rel (0) target = $region21
    $region20: #{tpu_custom_call.1} parent=1 // pred_region
      %43 = dma.done [#allocation8], 256
    $region21: #{tpu_custom_call.1} parent=1 // pred_fallthru
      _
    %p44 = scmp.eq.s32.totalorder 0, 0
    // Predicated region
    $region22: #{tpu_custom_call.1} parent=1 // pred_check
      %p45 = pneg %p44
    $region23: #{tpu_custom_call.1} parent=1 // pred_check_branch
      %47 = sbr.rel (%p45) target = $region25
    $region24: #{tpu_custom_call.1} parent=1 // pred_region
      %48 = vst [vmem:[#allocation2] sm:$0xff] 0.0
    $region25: #{tpu_custom_call.1} parent=1 // pred_fallthru
      _
    %s49 = sld [smem:[#allocation3]]
    %v50 = vld [vmem:[#allocation4] sm:$0xff]
    %v51 = vld [vmem:[#allocation4 + $0x8] sm:$0xff]
    %v52 = vld [vmem:[#allocation7] sm:$0xff]
    %v53 = vld [vmem:[#allocation7 + $0x8] sm:$0xff]
    %v54 = vsub.f32 %v50, %v52
    %v55 = vsub.f32 %v51, %v53
    %v56 = vmul.f32 %v54, %v54
    %v57 = vmul.f32 %v55, %v55
    %v58 = vstv %s49
    %v59 = vadd.f32 %v56, %v58
    %v60 = vadd.f32 %v57, %v58
    %v61 = vrcp.pop %v59
    %v62 = vrcp.pop %v60
    %v63 = vmul.f32 %v56, %v61
    %v64 = vmul.f32 %v57, %v62
    %v65 = vld [vmem:[#allocation2] sm:$0xff]
    %v66 = vadd.f32 %v63, %v64
    %v67 = vadd.f32 %v65, %v66
    %68 = vst [vmem:[#allocation2] sm:$0xff] %v67
    // Predicated region
    $region26: #{tpu_custom_call.1} parent=1 // pred_check
      %p69 = pneg %p44
    $region27: #{tpu_custom_call.1} parent=1 // pred_check_branch
      %71 = sbr.rel (%p69) target = $region29
    $region28: #{tpu_custom_call.1} parent=1 // pred_region
      %v72 = vld [vmem:[#allocation2] sm:$0xff]
      %73 = vadd.xlane.f32.xlu0 %v72
      %v74 = vpop.xlane.xlu0 %73
      %v75 = vrot.slane %v74, 4
      %v76 = vadd.f32 %v74, %v75
      %v77 = vrot.slane %v76, 2
      %v78 = vadd.f32 %v76, %v77
      %v79 = vrot.slane %v78, 1
      %v80 = vadd.f32 %v78, %v79
      %s81 = vtos %v80
      %s82 = scalar_lea.smem [#allocation9], 0
      %83 = sst [smem:[%s82]] %s81
    $region29: #{tpu_custom_call.1} parent=1 // pred_fallthru
      _
    // Predicated region
    $region30: #{tpu_custom_call.1} parent=1 // pred_check
      _
    $region31: #{tpu_custom_call.1} parent=1 // pred_check_branch
      %85 = sbr.rel (0) target = $region33
    $region32: #{tpu_custom_call.1} parent=1 // pred_region
      %s87 = ssub.s32 16, 16
      %88 = vsyncadd [#allocation6], %s87
      %91 = dma.smem_to_hbm [#allocation9], 16, %s3, [#allocation6]
    $region33: #{tpu_custom_call.1} parent=1 // pred_fallthru
      _
    // Predicated region
    $region34: #{tpu_custom_call.1} parent=1 // pred_check
      _
    $region35: #{tpu_custom_call.1} parent=1 // pred_check_branch
      %93 = sbr.rel (0) target = $region37
    $region36: #{tpu_custom_call.1} parent=1 // pred_region
      %94 = dma.done [#allocation6], 16
    $region37: #{tpu_custom_call.1} parent=1 // pred_fallthru
      _
    %95 = sfence
    %96 = vsyncpa [#allocation5], 1
    %97 = vsyncpa [#allocation8], 1
    %98 = vsyncpa [#allocation6], 1

</llo_original>
